<compile_context>
chip_gen: v7x
topology: tpu7x:2x2x1
jax: 0.10.0
libtpu: 0.0.40
codegen_flags: <defaults>
</compile_context>

<pallas_src>
import jax
import jax.numpy as jnp
from jax.experimental import pallas as pl
from jax.experimental.pallas import tpu as pltpu

# --- config (mirrors DialResNet18Head.__init__) -----------------------------
FEATURE_DIM = 512          # 512 * DialBasicBlock.expansion (expansion == 1)
NUM_SUB_HEADS = 3          # config.num_sub_heads
OUTPUT_K = 10              # config.output_k
HEAD_PAD = 128             # per-head class axis padded to one full lane tile
BATCH = 8                  # small batch for the example run

NEG_BIG = jnp.float32(-1e30)   # bias for dead (padded) lanes -> exp == 0


def _fused_head_kernel(x_ref, w_ref, b_ref, o_ref):
    """All sub-heads in one invocation.

    x_ref: (B, D) f32          (cast to bf16 in-kernel for the MXU)
    w_ref: (D, H*128) bf16     (heads packed along lanes, zero-padded cols)
    b_ref: (1, H*128) f32      (dead lanes hold -1e30)
    o_ref: (B, H*128) f32      (dead lanes come out as exact 0)
    Head h owns output lanes [h*128, h*128 + K); softmax is per-head over its
    128-lane segment, matching torch's per-head Softmax(dim=1).
    """
    x = x_ref[...].astype(jnp.bfloat16)
    # One MXU matmul covering all heads; f32 accumulation; bias added in f32.
    logits = jnp.dot(x, w_ref[...], preferred_element_type=jnp.float32)
    logits = logits + b_ref[...]

    # Per-head softmax on static, tile-aligned 128-lane segments.
    for h in range(NUM_SUB_HEADS):
        lo = h * HEAD_PAD
        seg = logits[:, lo:lo + HEAD_PAD]
        m = jnp.max(seg, axis=1, keepdims=True)          # real lanes dominate -1e30
        e = jnp.exp(seg - m)                              # dead lanes -> 0 exactly
        den = jnp.sum(e, axis=1, keepdims=True)
        o_ref[:, lo:lo + HEAD_PAD] = (e / den).astype(o_ref.dtype)


@jax.jit
def _fused_forward(x, w_packed, b_packed):
    B = x.shape[0]
    HK = w_packed.shape[1]
    vmem = pl.BlockSpec(memory_space=pltpu.MemorySpace.VMEM)
    slab = pl.pallas_call(
        _fused_head_kernel,
        out_shape=jax.ShapeDtypeStruct((B, HK), jnp.float32),
        in_specs=[vmem, vmem, vmem],
        out_specs=vmem,
    )(x, w_packed, b_packed)
    # Per-head slicing inside the jitted graph (trivial slices, fused by XLA).
    return tuple(slab[:, h * HEAD_PAD:h * HEAD_PAD + OUTPUT_K]
                 for h in range(NUM_SUB_HEADS))


def dial_resnet18_head_forward(x, w_packed, b_packed, kmeans_use_features=False):
    """Matches DialResNet18Head.forward: returns a Python list of length H."""
    if kmeans_use_features:
        # Torch branch: results.append(x) for every sub-head.
        return [x] * NUM_SUB_HEADS
    return list(_fused_forward(x, w_packed, b_packed))


def init_params(key, num_sub_heads=NUM_SUB_HEADS, d=FEATURE_DIM, k=OUTPUT_K,
                pad=HEAD_PAD):
    """nn.Linear-style uniform(-1/sqrt(D), 1/sqrt(D)) init, pre-packed+padded."""
    kw, kb = jax.random.split(key)
    bound = 1.0 / jnp.sqrt(jnp.float32(d))
    w = jax.random.uniform(kw, (num_sub_heads, d, k), jnp.float32,
                           minval=-bound, maxval=bound)
    b = jax.random.uniform(kb, (num_sub_heads, k), jnp.float32,
                           minval=-bound, maxval=bound)
    # Pad each head's class axis to a full 128-lane segment.
    w_pad = jnp.zeros((num_sub_heads, d, pad), jnp.float32).at[:, :, :k].set(w)
    b_pad = jnp.full((num_sub_heads, pad), NEG_BIG, jnp.float32).at[:, :k].set(b)
    # Pack heads along the class axis: (D, H*128). Weights bf16 (halves HBM
    # traffic, MXU-native); bias stays f32 (added after f32 accumulation).
    w_packed = jnp.transpose(w_pad, (1, 0, 2)).reshape(d, num_sub_heads * pad)
    w_packed = w_packed.astype(jnp.bfloat16)
    b_packed = b_pad.reshape(1, num_sub_heads * pad)
    return w_packed, b_packed


if __name__ == "__main__":
    key = jax.random.PRNGKey(0)
    kx, kp = jax.random.split(key)

    x = jax.random.normal(kx, (BATCH, FEATURE_DIM), jnp.float32)
    w_packed, b_packed = init_params(kp)

    results = dial_resnet18_head_forward(x, w_packed, b_packed)
    results = [jax.block_until_ready(r) for r in results]

    # Reference: same bf16-quantized inputs, plain JAX linear + softmax per head.
    x_q = x.astype(jnp.bfloat16).astype(jnp.float32)
    ok = True
    for h in range(NUM_SUB_HEADS):
        lo = h * HEAD_PAD
        w_h = w_packed[:, lo:lo + OUTPUT_K].astype(jnp.float32)
        b_h = b_packed[:, lo:lo + OUTPUT_K]
        ref_h = jax.nn.softmax(x_q @ w_h + b_h, axis=1)
        ok = ok and bool(jnp.allclose(results[h], ref_h, atol=2e-3, rtol=2e-3))
        ok = ok and bool(jnp.allclose(jnp.sum(results[h], axis=1), 1.0, atol=1e-3))
        ok = ok and results[h].shape == (BATCH, OUTPUT_K)

    # kmeans_use_features branch returns the raw features for each sub-head.
    feats = dial_resnet18_head_forward(x, w_packed, b_packed,
                                       kmeans_use_features=True)
    feats = [jax.block_until_ready(f) for f in feats]
    ok = ok and all(bool(jnp.array_equal(f, x)) for f in feats)

    print("KERNEL_OK" if ok else "KERNEL_MISMATCH")
</pallas_src>

<mosaic_0001>
module attributes {stable_mosaic.version = 11 : i64} {
  func.func @_fused_head_kernel(%arg0: memref<8x512xf32, #tpu.memory_space<vmem>>, %arg1: memref<512x384xbf16, #tpu.memory_space<vmem>>, %arg2: memref<1x384xf32, #tpu.memory_space<vmem>>, %arg3: memref<8x384xf32, #tpu.memory_space<vmem>>) attributes {dimension_semantics = [], scalar_prefetch = 0 : i64, scratch_operands = 0 : i64, tpu.core_type = #tpu.core_type<tc>} {
    %c0 = arith.constant 0 : index
    %c0_0 = arith.constant 0 : index
    %0 = vector.load %arg0[%c0, %c0_0] : memref<8x512xf32, #tpu.memory_space<vmem>>, vector<8x512xf32>
    %1 = arith.truncf %0 : vector<8x512xf32> to vector<8x512xbf16>
    %c0_1 = arith.constant 0 : index
    %c0_2 = arith.constant 0 : index
    %2 = vector.load %arg1[%c0_1, %c0_2] : memref<512x384xbf16, #tpu.memory_space<vmem>>, vector<512x384xbf16>
    %cst = arith.constant dense<0.000000e+00> : vector<8x384xf32>
    %3 = tpu.matmul %1, %2, %cst {dimension_numbers = #tpu.dot_dimension_numbers<[1], [0], [0], [1], [0, 0, 1, 1], [], []>} : vector<8x512xbf16>, vector<512x384xbf16>, vector<8x384xf32> -> vector<8x384xf32>
    %c0_3 = arith.constant 0 : index
    %c0_4 = arith.constant 0 : index
    %4 = vector.load %arg2[%c0_3, %c0_4] : memref<1x384xf32, #tpu.memory_space<vmem>>, vector<1x384xf32>
    %5 = vector.broadcast %4 : vector<1x384xf32> to vector<8x384xf32>
    %6 = arith.addf %3, %5 : vector<8x384xf32>
    %7 = vector.extract_strided_slice %6 {offsets = [0, 0], sizes = [8, 128], strides = [1, 1]} : vector<8x384xf32> to vector<8x128xf32>
    %cst_5 = arith.constant dense<0xFF800000> : vector<8xf32>
    %8 = vector.multi_reduction <maximumf>, %7, %cst_5 [1] : vector<8x128xf32> to vector<8xf32>
    %9 = vector.shape_cast %8 : vector<8xf32> to vector<8x1xf32>
    %10 = vector.broadcast %9 : vector<8x1xf32> to vector<8x128xf32>
    %11 = arith.subf %7, %10 : vector<8x128xf32>
    %12 = math.exp %11 : vector<8x128xf32>
    %cst_6 = arith.constant dense<0.000000e+00> : vector<8xf32>
    %13 = vector.multi_reduction <add>, %12, %cst_6 [1] : vector<8x128xf32> to vector<8xf32>
    %14 = vector.shape_cast %13 : vector<8xf32> to vector<8x1xf32>
    %15 = vector.broadcast %14 : vector<8x1xf32> to vector<8x128xf32>
    %16 = arith.divf %12, %15 : vector<8x128xf32>
    %c0_7 = arith.constant 0 : index
    %c0_8 = arith.constant 0 : index
    %17 = vector.load %arg3[%c0_7, %c0_8] : memref<8x384xf32, #tpu.memory_space<vmem>>, vector<8x128xf32>
    tpu.vector_store %arg3[%c0_7, %c0_8], %16 {strides = array<i32>} : memref<8x384xf32, #tpu.memory_space<vmem>>, vector<8x128xf32>,
    %18 = vector.extract_strided_slice %6 {offsets = [0, 128], sizes = [8, 128], strides = [1, 1]} : vector<8x384xf32> to vector<8x128xf32>
    %cst_9 = arith.constant dense<0xFF800000> : vector<8xf32>
    %19 = vector.multi_reduction <maximumf>, %18, %cst_9 [1] : vector<8x128xf32> to vector<8xf32>
    %20 = vector.shape_cast %19 : vector<8xf32> to vector<8x1xf32>
    %21 = vector.broadcast %20 : vector<8x1xf32> to vector<8x128xf32>
    %22 = arith.subf %18, %21 : vector<8x128xf32>
    %23 = math.exp %22 : vector<8x128xf32>
    %cst_10 = arith.constant dense<0.000000e+00> : vector<8xf32>
    %24 = vector.multi_reduction <add>, %23, %cst_10 [1] : vector<8x128xf32> to vector<8xf32>
    %25 = vector.shape_cast %24 : vector<8xf32> to vector<8x1xf32>
    %26 = vector.broadcast %25 : vector<8x1xf32> to vector<8x128xf32>
    %27 = arith.divf %23, %26 : vector<8x128xf32>
    %c0_11 = arith.constant 0 : index
    %c128 = arith.constant 128 : index
    %28 = vector.load %arg3[%c0_11, %c128] : memref<8x384xf32, #tpu.memory_space<vmem>>, vector<8x128xf32>
    tpu.vector_store %arg3[%c0_11, %c128], %27 {strides = array<i32>} : memref<8x384xf32, #tpu.memory_space<vmem>>, vector<8x128xf32>,
    %29 = vector.extract_strided_slice %6 {offsets = [0, 256], sizes = [8, 128], strides = [1, 1]} : vector<8x384xf32> to vector<8x128xf32>
    %cst_12 = arith.constant dense<0xFF800000> : vector<8xf32>
    %30 = vector.multi_reduction <maximumf>, %29, %cst_12 [1] : vector<8x128xf32> to vector<8xf32>
    %31 = vector.shape_cast %30 : vector<8xf32> to vector<8x1xf32>
    %32 = vector.broadcast %31 : vector<8x1xf32> to vector<8x128xf32>
    %33 = arith.subf %29, %32 : vector<8x128xf32>
    %34 = math.exp %33 : vector<8x128xf32>
    %cst_13 = arith.constant dense<0.000000e+00> : vector<8xf32>
    %35 = vector.multi_reduction <add>, %34, %cst_13 [1] : vector<8x128xf32> to vector<8xf32>
    %36 = vector.shape_cast %35 : vector<8xf32> to vector<8x1xf32>
    %37 = vector.broadcast %36 : vector<8x1xf32> to vector<8x128xf32>
    %38 = arith.divf %34, %37 : vector<8x128xf32>
    %c0_14 = arith.constant 0 : index
    %c256 = arith.constant 256 : index
    %39 = vector.load %arg3[%c0_14, %c256] : memref<8x384xf32, #tpu.memory_space<vmem>>, vector<8x128xf32>
    tpu.vector_store %arg3[%c0_14, %c256], %38 {strides = array<i32>} : memref<8x384xf32, #tpu.memory_space<vmem>>, vector<8x128xf32>,
    return
  }
}

</mosaic_0001>

<llo_original>
// kernel: _fused_forward.1
$region0: #{_fused_forward.1}
  #allocation0 [shape = 'u32[]', space=smem, size = 0x4, offset = 0x4, fixed_abs, tag = 'smem constant byte address 0x4 - core index']
  #allocation1 [shape = 'u32[144,128]{1,0:T(1,128)}', space=vmem, size = 0x12000, scoped, tag = 'internal scratch']
  %s0 = inlined_call_operand.hbm [shape: f32[8,512], index: 0, kind: input, shape index: {}]
  %s1 = inlined_call_operand.hbm [shape: bf16[512,384], index: 1, kind: input, shape index: {}]
  %s2 = inlined_call_operand.vmem [shape: f32[1,384], index: 2, kind: input, shape index: {}]
  %s3 = inlined_call_operand.vmem [shape: f32[8,384], index: 3, kind: output, shape index: {}]
  %s4 = sld [smem:[#allocation0]]
  $region30: #{_fused_forward.1} parent=0
    _
  %s6 = ssub.s32 1, %s4
  %s7 = scalar_select 0, %s6, %s4
  $region1: #{_fused_forward.1} parent=0
    #allocation2 [shape = 'u8[16384]{0}', space=vmem, size = 0x4000, scoped, tag = 'input window, operand 0, single buffered']
    #allocation3 [shape = 's32[1]{0}', space=sflag, size = 0x4, scoped, tag = 'scoped memory for _fused_forward.1']
    #allocation4 [shape = 'u8[393216]{0}', space=vmem, size = 0x60000, scoped, tag = 'input window, operand 1, single buffered']
    #allocation5 [shape = 's32[1]{0}', space=sflag, size = 0x4, scoped, tag = 'scoped memory for _fused_forward.1']
    %8 = vsyncpa [#allocation3], 0
    %9 = vsyncpa [#allocation5], 0
    // Predicated region
    $region2: #{_fused_forward.1} parent=1 // pred_check
      _
    $region3: #{_fused_forward.1} parent=1 // pred_check_branch
      %11 = sbr.rel (0) target = $region5
    $region4: #{_fused_forward.1} parent=1 // pred_region
      %s13 = ssub.s32 512, 512
      %14 = vsyncadd [#allocation3], %s13
      %s16 = sshll.u32 [#allocation2], 4
      %s17 = int_to_ptr.vmem [resolvable:$true] %s16
      %19 = dma.hbm_to_vmem [thread:$0]  %s0, 512, %s17, [#allocation3]
    $region5: #{_fused_forward.1} parent=1 // pred_fallthru
      _
    // Predicated region
    $region6: #{_fused_forward.1} parent=1 // pred_check
      _
    $region7: #{_fused_forward.1} parent=1 // pred_check_branch
      %21 = sbr.rel (0) target = $region9
    $region8: #{_fused_forward.1} parent=1 // pred_region
      %s23 = ssub.s32 12288, 12288
      %24 = vsyncadd [#allocation5], %s23
      %s25 = sshll.u32 [#allocation4], 4
      %s26 = int_to_ptr.vmem [resolvable:$true] %s25
      %31 = dma.hbm_to_vmem [thread:$0]  %s1, 12288, %s26, [#allocation5], 192, 192, 12
    $region9: #{_fused_forward.1} parent=1 // pred_fallthru
      _
    // Predicated region
    $region10: #{_fused_forward.1} parent=1 // pred_check
      _
    $region11: #{_fused_forward.1} parent=1 // pred_check_branch
      %33 = sbr.rel (0) target = $region13
    $region12: #{_fused_forward.1} parent=1 // pred_region
      _
    $region13: #{_fused_forward.1} parent=1 // pred_fallthru
      _
    // Predicated region
    $region14: #{_fused_forward.1} parent=1 // pred_check
      _
    $region15: #{_fused_forward.1} parent=1 // pred_check_branch
      %35 = sbr.rel (0) target = $region17
    $region16: #{_fused_forward.1} parent=1 // pred_region
      %36 = dma.done [#allocation3], 512
    $region17: #{_fused_forward.1} parent=1 // pred_fallthru
      _
    // Predicated region
    $region18: #{_fused_forward.1} parent=1 // pred_check
      _
    $region19: #{_fused_forward.1} parent=1 // pred_check_branch
      %38 = sbr.rel (0) target = $region21
    $region20: #{_fused_forward.1} parent=1 // pred_region
      %39 = dma.done [#allocation5], 12288
    $region21: #{_fused_forward.1} parent=1 // pred_fallthru
      _
    %v41 = vld [vmem:[#allocation2] sm:$0xff]
    %v42 = vld [vmem:[#allocation2 + $0x8] sm:$0xff]
    %v43 = vld [vmem:[#allocation2 + $0x10] sm:$0xff]
    %v44 = vld [vmem:[#allocation2 + $0x18] sm:$0xff]
    %v45 = vpack.c.bf16 %v41, %v41
    %v46 = vpack.c.bf16 %v42, %v42
    %v47 = vpack.c.bf16 %v43, %v43
    %v48 = vpack.c.bf16 %v44, %v44
    %v49 = vld [vmem:[#allocation4] sm:$0xff]
    %v50 = vld [vmem:[#allocation4 + $0x8] sm:$0xf]
    %v51 = vld [vmem:[#allocation4 + $0xc] sm:$0xff]
    %v52 = vld [vmem:[#allocation4 + $0x14] sm:$0xf]
    %v53 = vld [vmem:[#allocation4 + $0x18] sm:$0xff]
    %v54 = vld [vmem:[#allocation4 + $0x20] sm:$0xf]
    %v55 = vld [vmem:[#allocation4 + $0x24] sm:$0xff]
    %v56 = vld [vmem:[#allocation4 + $0x2c] sm:$0xf]
    %v57 = vld [vmem:[#allocation4 + $0x30] sm:$0xff]
    %v58 = vld [vmem:[#allocation4 + $0x38] sm:$0xf]
    %v59 = vld [vmem:[#allocation4 + $0x3c] sm:$0xff]
    %v60 = vld [vmem:[#allocation4 + $0x44] sm:$0xf]
    %v61 = vld [vmem:[#allocation4 + $0x48] sm:$0xff]
    %v62 = vld [vmem:[#allocation4 + $0x50] sm:$0xf]
    %v63 = vld [vmem:[#allocation4 + $0x54] sm:$0xff]
    %v64 = vld [vmem:[#allocation4 + $0x5c] sm:$0xf]
    %v65 = vld [vmem:[#allocation4 + $0x60] sm:$0xff]
    %v66 = vld [vmem:[#allocation4 + $0x68] sm:$0xf]
    %v67 = vld [vmem:[#allocation4 + $0x6c] sm:$0xff]
    %v68 = vld [vmem:[#allocation4 + $0x74] sm:$0xf]
    %v69 = vld [vmem:[#allocation4 + $0x78] sm:$0xff]
    %v70 = vld [vmem:[#allocation4 + $0x80] sm:$0xf]
    %v71 = vld [vmem:[#allocation4 + $0x84] sm:$0xff]
    %v72 = vld [vmem:[#allocation4 + $0x8c] sm:$0xf]
    %v73 = vld [vmem:[#allocation4 + $0x90] sm:$0xff]
    %v74 = vld [vmem:[#allocation4 + $0x98] sm:$0xf]
    %v75 = vld [vmem:[#allocation4 + $0x9c] sm:$0xff]
    %v76 = vld [vmem:[#allocation4 + $0xa4] sm:$0xf]
    %v77 = vld [vmem:[#allocation4 + $0xa8] sm:$0xff]
    %v78 = vld [vmem:[#allocation4 + $0xb0] sm:$0xf]
    %v79 = vld [vmem:[#allocation4 + $0xb4] sm:$0xff]
    %v80 = vld [vmem:[#allocation4 + $0xbc] sm:$0xf]
    %v81 = vld [vmem:[#allocation4 + $0xc0] sm:$0xff]
    %v82 = vld [vmem:[#allocation4 + $0xc8] sm:$0xf]
    %v83 = vld [vmem:[#allocation4 + $0xcc] sm:$0xff]
    %v84 = vld [vmem:[#allocation4 + $0xd4] sm:$0xf]
    %v85 = vld [vmem:[#allocation4 + $0xd8] sm:$0xff]
    %v86 = vld [vmem:[#allocation4 + $0xe0] sm:$0xf]
    %v87 = vld [vmem:[#allocation4 + $0xe4] sm:$0xff]
    %v88 = vld [vmem:[#allocation4 + $0xec] sm:$0xf]
    %v89 = vld [vmem:[#allocation4 + $0xf0] sm:$0xff]
    %v90 = vld [vmem:[#allocation4 + $0xf8] sm:$0xf]
    %v91 = vld [vmem:[#allocation4 + $0xfc] sm:$0xff]
    %v92 = vld [vmem:[#allocation4 + $0x104] sm:$0xf]
    %v93 = vld [vmem:[#allocation4 + $0x108] sm:$0xff]
    %v94 = vld [vmem:[#allocation4 + $0x110] sm:$0xf]
    %v95 = vld [vmem:[#allocation4 + $0x114] sm:$0xff]
    %v96 = vld [vmem:[#allocation4 + $0x11c] sm:$0xf]
    %v97 = vld [vmem:[#allocation4 + $0x120] sm:$0xff]
    %v98 = vld [vmem:[#allocation4 + $0x128] sm:$0xf]
    %v99 = vld [vmem:[#allocation4 + $0x12c] sm:$0xff]
    %v100 = vld [vmem:[#allocation4 + $0x134] sm:$0xf]
    %v101 = vld [vmem:[#allocation4 + $0x138] sm:$0xff]
    %v102 = vld [vmem:[#allocation4 + $0x140] sm:$0xf]
    %v103 = vld [vmem:[#allocation4 + $0x144] sm:$0xff]
    %v104 = vld [vmem:[#allocation4 + $0x14c] sm:$0xf]
    %v105 = vld [vmem:[#allocation4 + $0x150] sm:$0xff]
    %v106 = vld [vmem:[#allocation4 + $0x158] sm:$0xf]
    %v107 = vld [vmem:[#allocation4 + $0x15c] sm:$0xff]
    %v108 = vld [vmem:[#allocation4 + $0x164] sm:$0xf]
    %v109 = vld [vmem:[#allocation4 + $0x168] sm:$0xff]
    %v110 = vld [vmem:[#allocation4 + $0x170] sm:$0xf]
    %v111 = vld [vmem:[#allocation4 + $0x174] sm:$0xff]
    %v112 = vld [vmem:[#allocation4 + $0x17c] sm:$0xf]
    %v113 = vld [vmem:[#allocation4 + $0x180] sm:$0xff]
    %v114 = vld [vmem:[#allocation4 + $0x188] sm:$0xf]
    %v115 = vld [vmem:[#allocation4 + $0x18c] sm:$0xff]
    %v116 = vld [vmem:[#allocation4 + $0x194] sm:$0xf]
    %v117 = vld [vmem:[#allocation4 + $0x198] sm:$0xff]
    %v118 = vld [vmem:[#allocation4 + $0x1a0] sm:$0xf]
    %v119 = vld [vmem:[#allocation4 + $0x1a4] sm:$0xff]
    %v120 = vld [vmem:[#allocation4 + $0x1ac] sm:$0xf]
    %v121 = vld [vmem:[#allocation4 + $0x1b0] sm:$0xff]
    %v122 = vld [vmem:[#allocation4 + $0x1b8] sm:$0xf]
    %v123 = vld [vmem:[#allocation4 + $0x1bc] sm:$0xff]
    %v124 = vld [vmem:[#allocation4 + $0x1c4] sm:$0xf]
    %v125 = vld [vmem:[#allocation4 + $0x1c8] sm:$0xff]
    %v126 = vld [vmem:[#allocation4 + $0x1d0] sm:$0xf]
    %v127 = vld [vmem:[#allocation4 + $0x1d4] sm:$0xff]
    %v128 = vld [vmem:[#allocation4 + $0x1dc] sm:$0xf]
    %v129 = vld [vmem:[#allocation4 + $0x1e0] sm:$0xff]
    %v130 = vld [vmem:[#allocation4 + $0x1e8] sm:$0xf]
    %v131 = vld [vmem:[#allocation4 + $0x1ec] sm:$0xff]
    %v132 = vld [vmem:[#allocation4 + $0x1f4] sm:$0xf]
    %v133 = vld [vmem:[#allocation4 + $0x1f8] sm:$0xff]
    %v134 = vld [vmem:[#allocation4 + $0x200] sm:$0xf]
    %v135 = vld [vmem:[#allocation4 + $0x204] sm:$0xff]
    %v136 = vld [vmem:[#allocation4 + $0x20c] sm:$0xf]
    %v137 = vld [vmem:[#allocation4 + $0x210] sm:$0xff]
    %v138 = vld [vmem:[#allocation4 + $0x218] sm:$0xf]
    %v139 = vld [vmem:[#allocation4 + $0x21c] sm:$0xff]
    %v140 = vld [vmem:[#allocation4 + $0x224] sm:$0xf]
    %v141 = vld [vmem:[#allocation4 + $0x228] sm:$0xff]
    %v142 = vld [vmem:[#allocation4 + $0x230] sm:$0xf]
    %v143 = vld [vmem:[#allocation4 + $0x234] sm:$0xff]
    %v144 = vld [vmem:[#allocation4 + $0x23c] sm:$0xf]
    %v145 = vld [vmem:[#allocation4 + $0x240] sm:$0xff]
    %v146 = vld [vmem:[#allocation4 + $0x248] sm:$0xf]
    %v147 = vld [vmem:[#allocation4 + $0x24c] sm:$0xff]
    %v148 = vld [vmem:[#allocation4 + $0x254] sm:$0xf]
    %v149 = vld [vmem:[#allocation4 + $0x258] sm:$0xff]
    %v150 = vld [vmem:[#allocation4 + $0x260] sm:$0xf]
    %v151 = vld [vmem:[#allocation4 + $0x264] sm:$0xff]
    %v152 = vld [vmem:[#allocation4 + $0x26c] sm:$0xf]
    %v153 = vld [vmem:[#allocation4 + $0x270] sm:$0xff]
    %v154 = vld [vmem:[#allocation4 + $0x278] sm:$0xf]
    %v155 = vld [vmem:[#allocation4 + $0x27c] sm:$0xff]
    %v156 = vld [vmem:[#allocation4 + $0x284] sm:$0xf]
    %v157 = vld [vmem:[#allocation4 + $0x288] sm:$0xff]
    %v158 = vld [vmem:[#allocation4 + $0x290] sm:$0xf]
    %v159 = vld [vmem:[#allocation4 + $0x294] sm:$0xff]
    %v160 = vld [vmem:[#allocation4 + $0x29c] sm:$0xf]
    %v161 = vld [vmem:[#allocation4 + $0x2a0] sm:$0xff]
    %v162 = vld [vmem:[#allocation4 + $0x2a8] sm:$0xf]
    %v163 = vld [vmem:[#allocation4 + $0x2ac] sm:$0xff]
    %v164 = vld [vmem:[#allocation4 + $0x2b4] sm:$0xf]
    %v165 = vld [vmem:[#allocation4 + $0x2b8] sm:$0xff]
    %v166 = vld [vmem:[#allocation4 + $0x2c0] sm:$0xf]
    %v167 = vld [vmem:[#allocation4 + $0x2c4] sm:$0xff]
    %v168 = vld [vmem:[#allocation4 + $0x2cc] sm:$0xf]
    %v169 = vld [vmem:[#allocation4 + $0x2d0] sm:$0xff]
    %v170 = vld [vmem:[#allocation4 + $0x2d8] sm:$0xf]
    %v171 = vld [vmem:[#allocation4 + $0x2dc] sm:$0xff]
    %v172 = vld [vmem:[#allocation4 + $0x2e4] sm:$0xf]
    %v173 = vld [vmem:[#allocation4 + $0x2e8] sm:$0xff]
    %v174 = vld [vmem:[#allocation4 + $0x2f0] sm:$0xf]
    %v175 = vld [vmem:[#allocation4 + $0x2f4] sm:$0xff]
    %v176 = vld [vmem:[#allocation4 + $0x2fc] sm:$0xf]
    %v177 = vld [vmem:[%s2] sm:$0x7]
    %v179 = vlaneseq
    %v180 = vshrl.u32 %v179, 7
    %v181 = vsub.s32 0, %v180
    %v182 = vrot.slane %v177, %v181
    %v183 = vlaneseq
    %v184 = vshrl.u32 %v183, 7
    %v185 = vsub.s32 1, %v184
    %v186 = vrot.slane %v177, %v185
    %v187 = vlaneseq
    %v188 = vshrl.u32 %v187, 7
    %v189 = vsub.s32 2, %v188
    %v190 = vrot.slane %v177, %v189
    %v322 = vunpack.c.l.b16 %v49
    %v323 = vunpack.c.h.b16 %v49
    %v324 = vunpack.c.l.b16 %v50
    %v325 = vunpack.c.l.b16 %v51
    %v326 = vunpack.c.h.b16 %v51
    %v327 = vunpack.c.l.b16 %v52
    %v328 = vunpack.c.l.b16 %v53
    %v329 = vunpack.c.h.b16 %v53
    %v330 = vunpack.c.l.b16 %v54
    %v331 = vunpack.c.l.b16 %v55
    %v332 = vunpack.c.h.b16 %v55
    %v333 = vunpack.c.l.b16 %v56
    %v334 = vunpack.c.l.b16 %v57
    %v335 = vunpack.c.h.b16 %v57
    %v336 = vunpack.c.l.b16 %v58
    %v337 = vunpack.c.l.b16 %v59
    %v338 = vunpack.c.h.b16 %v59
    %v339 = vunpack.c.l.b16 %v60
    %v340 = vunpack.c.l.b16 %v61
    %v341 = vunpack.c.h.b16 %v61
    %v342 = vunpack.c.l.b16 %v62
    %v343 = vunpack.c.l.b16 %v63
    %v344 = vunpack.c.h.b16 %v63
    %v345 = vunpack.c.l.b16 %v64
    %v346 = vunpack.c.l.b16 %v65
    %v347 = vunpack.c.h.b16 %v65
    %v348 = vunpack.c.l.b16 %v66
    %v349 = vunpack.c.l.b16 %v67
    %v350 = vunpack.c.h.b16 %v67
    %v351 = vunpack.c.l.b16 %v68
    %v352 = vunpack.c.l.b16 %v69
    %v353 = vunpack.c.h.b16 %v69
    %v354 = vunpack.c.l.b16 %v70
    %v355 = vunpack.c.l.b16 %v71
    %v356 = vunpack.c.h.b16 %v71
    %v357 = vunpack.c.l.b16 %v72
    %v358 = vunpack.c.l.b16 %v73
    %v359 = vunpack.c.h.b16 %v73
    %v360 = vunpack.c.l.b16 %v74
    %v361 = vunpack.c.l.b16 %v75
    %v362 = vunpack.c.h.b16 %v75
    %v363 = vunpack.c.l.b16 %v76
    %v364 = vunpack.c.l.b16 %v77
    %v365 = vunpack.c.h.b16 %v77
    %v366 = vunpack.c.l.b16 %v78
    %v367 = vunpack.c.l.b16 %v79
    %v368 = vunpack.c.h.b16 %v79
    %v369 = vunpack.c.l.b16 %v80
    %v370 = vunpack.c.l.b16 %v81
    %v371 = vunpack.c.h.b16 %v81
    %v372 = vunpack.c.l.b16 %v82
    %v373 = vunpack.c.l.b16 %v83
    %v374 = vunpack.c.h.b16 %v83
    %v375 = vunpack.c.l.b16 %v84
    %v376 = vunpack.c.l.b16 %v85
    %v377 = vunpack.c.h.b16 %v85
    %v378 = vunpack.c.l.b16 %v86
    %v379 = vunpack.c.l.b16 %v87
    %v380 = vunpack.c.h.b16 %v87
    %v381 = vunpack.c.l.b16 %v88
    %v382 = vunpack.c.l.b16 %v89
    %v383 = vunpack.c.h.b16 %v89
    %v384 = vunpack.c.l.b16 %v90
    %v385 = vunpack.c.l.b16 %v91
    %v386 = vunpack.c.h.b16 %v91
    %v387 = vunpack.c.l.b16 %v92
    %v388 = vunpack.c.l.b16 %v93
    %v389 = vunpack.c.h.b16 %v93
    %v390 = vunpack.c.l.b16 %v94
    %v391 = vunpack.c.l.b16 %v95
    %v392 = vunpack.c.h.b16 %v95
    %v393 = vunpack.c.l.b16 %v96
    %v394 = vunpack.c.l.b16 %v97
    %v395 = vunpack.c.h.b16 %v97
    %v396 = vunpack.c.l.b16 %v98
    %v397 = vunpack.c.l.b16 %v99
    %v398 = vunpack.c.h.b16 %v99
    %v399 = vunpack.c.l.b16 %v100
    %v400 = vunpack.c.l.b16 %v101
    %v401 = vunpack.c.h.b16 %v101
    %v402 = vunpack.c.l.b16 %v102
    %v403 = vunpack.c.l.b16 %v103
    %v404 = vunpack.c.h.b16 %v103
    %v405 = vunpack.c.l.b16 %v104
    %v406 = vunpack.c.l.b16 %v105
    %v407 = vunpack.c.h.b16 %v105
    %v408 = vunpack.c.l.b16 %v106
    %v409 = vunpack.c.l.b16 %v107
    %v410 = vunpack.c.h.b16 %v107
    %v411 = vunpack.c.l.b16 %v108
    %v412 = vunpack.c.l.b16 %v109
    %v413 = vunpack.c.h.b16 %v109
    %v414 = vunpack.c.l.b16 %v110
    %v415 = vunpack.c.l.b16 %v111
    %v416 = vunpack.c.h.b16 %v111
    %v417 = vunpack.c.l.b16 %v112
    %v418 = vunpack.c.l.b16 %v113
    %v419 = vunpack.c.h.b16 %v113
    %v420 = vunpack.c.l.b16 %v114
    %v421 = vunpack.c.l.b16 %v115
    %v422 = vunpack.c.h.b16 %v115
    %v423 = vunpack.c.l.b16 %v116
    %v424 = vunpack.c.l.b16 %v117
    %v425 = vunpack.c.h.b16 %v117
    %v426 = vunpack.c.l.b16 %v118
    %v427 = vunpack.c.l.b16 %v119
    %v428 = vunpack.c.h.b16 %v119
    %v429 = vunpack.c.l.b16 %v120
    %v430 = vunpack.c.l.b16 %v121
    %v431 = vunpack.c.h.b16 %v121
    %v432 = vunpack.c.l.b16 %v122
    %v433 = vunpack.c.l.b16 %v123
    %v434 = vunpack.c.h.b16 %v123
    %v435 = vunpack.c.l.b16 %v124
    %v436 = vunpack.c.l.b16 %v125
    %v437 = vunpack.c.h.b16 %v125
    %v438 = vunpack.c.l.b16 %v126
    %v439 = vunpack.c.l.b16 %v127
    %v440 = vunpack.c.h.b16 %v127
    %v441 = vunpack.c.l.b16 %v128
    %v442 = vunpack.c.l.b16 %v129
    %v443 = vunpack.c.h.b16 %v129
    %v444 = vunpack.c.l.b16 %v130
    %v445 = vunpack.c.l.b16 %v131
    %v446 = vunpack.c.h.b16 %v131
    %v447 = vunpack.c.l.b16 %v132
    %v448 = vunpack.c.l.b16 %v133
    %v449 = vunpack.c.h.b16 %v133
    %v450 = vunpack.c.l.b16 %v134
    %v451 = vunpack.c.l.b16 %v135
    %v452 = vunpack.c.h.b16 %v135
    %v453 = vunpack.c.l.b16 %v136
    %v454 = vunpack.c.l.b16 %v137
    %v455 = vunpack.c.h.b16 %v137
    %v456 = vunpack.c.l.b16 %v138
    %v457 = vunpack.c.l.b16 %v139
    %v458 = vunpack.c.h.b16 %v139
    %v459 = vunpack.c.l.b16 %v140
    %v460 = vunpack.c.l.b16 %v141
    %v461 = vunpack.c.h.b16 %v141
    %v462 = vunpack.c.l.b16 %v142
    %v463 = vunpack.c.l.b16 %v143
    %v464 = vunpack.c.h.b16 %v143
    %v465 = vunpack.c.l.b16 %v144
    %v466 = vunpack.c.l.b16 %v145
    %v467 = vunpack.c.h.b16 %v145
    %v468 = vunpack.c.l.b16 %v146
    %v469 = vunpack.c.l.b16 %v147
    %v470 = vunpack.c.h.b16 %v147
    %v471 = vunpack.c.l.b16 %v148
    %v472 = vunpack.c.l.b16 %v149
    %v473 = vunpack.c.h.b16 %v149
    %v474 = vunpack.c.l.b16 %v150
    %v475 = vunpack.c.l.b16 %v151
    %v476 = vunpack.c.h.b16 %v151
    %v477 = vunpack.c.l.b16 %v152
    %v478 = vunpack.c.l.b16 %v153
    %v479 = vunpack.c.h.b16 %v153
    %v480 = vunpack.c.l.b16 %v154
    %v481 = vunpack.c.l.b16 %v155
    %v482 = vunpack.c.h.b16 %v155
    %v483 = vunpack.c.l.b16 %v156
    %v484 = vunpack.c.l.b16 %v157
    %v485 = vunpack.c.h.b16 %v157
    %v486 = vunpack.c.l.b16 %v158
    %v487 = vunpack.c.l.b16 %v159
    %v488 = vunpack.c.h.b16 %v159
    %v489 = vunpack.c.l.b16 %v160
    %v490 = vunpack.c.l.b16 %v161
    %v491 = vunpack.c.h.b16 %v161
    %v492 = vunpack.c.l.b16 %v162
    %v493 = vunpack.c.l.b16 %v163
    %v494 = vunpack.c.h.b16 %v163
    %v495 = vunpack.c.l.b16 %v164
    %v496 = vunpack.c.l.b16 %v165
    %v497 = vunpack.c.h.b16 %v165
    %v498 = vunpack.c.l.b16 %v166
    %v499 = vunpack.c.l.b16 %v167
    %v500 = vunpack.c.h.b16 %v167
    %v501 = vunpack.c.l.b16 %v168
    %v502 = vunpack.c.l.b16 %v169
    %v503 = vunpack.c.h.b16 %v169
    %v504 = vunpack.c.l.b16 %v170
    %v505 = vunpack.c.l.b16 %v171
    %v506 = vunpack.c.h.b16 %v171
    %v507 = vunpack.c.l.b16 %v172
    %v508 = vunpack.c.l.b16 %v173
    %v509 = vunpack.c.h.b16 %v173
    %v510 = vunpack.c.l.b16 %v174
    %v511 = vunpack.c.l.b16 %v175
    %v512 = vunpack.c.h.b16 %v175
    %v513 = vunpack.c.l.b16 %v176
    %v514 = vpack.c.b16 %v325, %v322
    %v515 = vpack.c.b16 %v326, %v323
    %v516 = vpack.c.b16 %v327, %v324
    %v517 = vpack.c.b16 %v331, %v328
    %v518 = vpack.c.b16 %v332, %v329
    %v519 = vpack.c.b16 %v333, %v330
    %v520 = vpack.c.b16 %v337, %v334
    %v521 = vpack.c.b16 %v338, %v335
    %v522 = vpack.c.b16 %v339, %v336
    %v523 = vpack.c.b16 %v343, %v340
    %v524 = vpack.c.b16 %v344, %v341
    %v525 = vpack.c.b16 %v345, %v342
    %v526 = vpack.c.b16 %v349, %v346
    %v527 = vpack.c.b16 %v350, %v347
    %v528 = vpack.c.b16 %v351, %v348
    %v529 = vpack.c.b16 %v355, %v352
    %v530 = vpack.c.b16 %v356, %v353
    %v531 = vpack.c.b16 %v357, %v354
    %v532 = vpack.c.b16 %v361, %v358
    %v533 = vpack.c.b16 %v362, %v359
    %v534 = vpack.c.b16 %v363, %v360
    %v535 = vpack.c.b16 %v367, %v364
    %v536 = vpack.c.b16 %v368, %v365
    %v537 = vpack.c.b16 %v369, %v366
    %v538 = vpack.c.b16 %v373, %v370
    %v539 = vpack.c.b16 %v374, %v371
    %v540 = vpack.c.b16 %v375, %v372
    %v541 = vpack.c.b16 %v379, %v376
    %v542 = vpack.c.b16 %v380, %v377
    %v543 = vpack.c.b16 %v381, %v378
    %v544 = vpack.c.b16 %v385, %v382
    %v545 = vpack.c.b16 %v386, %v383
    %v546 = vpack.c.b16 %v387, %v384
    %v547 = vpack.c.b16 %v391, %v388
    %v548 = vpack.c.b16 %v392, %v389
    %v549 = vpack.c.b16 %v393, %v390
    %v550 = vpack.c.b16 %v397, %v394
    %v551 = vpack.c.b16 %v398, %v395
    %v552 = vpack.c.b16 %v399, %v396
    %v553 = vpack.c.b16 %v403, %v400
    %v554 = vpack.c.b16 %v404, %v401
    %v555 = vpack.c.b16 %v405, %v402
    %v556 = vpack.c.b16 %v409, %v406
    %v557 = vpack.c.b16 %v410, %v407
    %v558 = vpack.c.b16 %v411, %v408
    %v559 = vpack.c.b16 %v415, %v412
    %v560 = vpack.c.b16 %v416, %v413
    %v561 = vpack.c.b16 %v417, %v414
    %v562 = vpack.c.b16 %v421, %v418
    %v563 = vpack.c.b16 %v422, %v419
    %v564 = vpack.c.b16 %v423, %v420
    %v565 = vpack.c.b16 %v427, %v424
    %v566 = vpack.c.b16 %v428, %v425
    %v567 = vpack.c.b16 %v429, %v426
    %v568 = vpack.c.b16 %v433, %v430
    %v569 = vpack.c.b16 %v434, %v431
    %v570 = vpack.c.b16 %v435, %v432
    %v571 = vpack.c.b16 %v439, %v436
    %v572 = vpack.c.b16 %v440, %v437
    %v573 = vpack.c.b16 %v441, %v438
    %v574 = vpack.c.b16 %v445, %v442
    %v575 = vpack.c.b16 %v446, %v443
    %v576 = vpack.c.b16 %v447, %v444
    %v577 = vpack.c.b16 %v451, %v448
    %v578 = vpack.c.b16 %v452, %v449
    %v579 = vpack.c.b16 %v453, %v450
    %v580 = vpack.c.b16 %v457, %v454
    %v581 = vpack.c.b16 %v458, %v455
    %v582 = vpack.c.b16 %v459, %v456
    %v583 = vpack.c.b16 %v463, %v460
    %v584 = vpack.c.b16 %v464, %v461
    %v585 = vpack.c.b16 %v465, %v462
    %v586 = vpack.c.b16 %v469, %v466
    %v587 = vpack.c.b16 %v470, %v467
    %v588 = vpack.c.b16 %v471, %v468
    %v589 = vpack.c.b16 %v475, %v472
    %v590 = vpack.c.b16 %v476, %v473
    %v591 = vpack.c.b16 %v477, %v474
    %v592 = vpack.c.b16 %v481, %v478
    %v593 = vpack.c.b16 %v482, %v479
    %v594 = vpack.c.b16 %v483, %v480
    %v595 = vpack.c.b16 %v487, %v484
    %v596 = vpack.c.b16 %v488, %v485
    %v597 = vpack.c.b16 %v489, %v486
    %v598 = vpack.c.b16 %v493, %v490
    %v599 = vpack.c.b16 %v494, %v491
    %v600 = vpack.c.b16 %v495, %v492
    %v601 = vpack.c.b16 %v499, %v496
    %v602 = vpack.c.b16 %v500, %v497
    %v603 = vpack.c.b16 %v501, %v498
    %v604 = vpack.c.b16 %v505, %v502
    %v605 = vpack.c.b16 %v506, %v503
    %v606 = vpack.c.b16 %v507, %v504
    %v607 = vpack.c.b16 %v511, %v508
    %v608 = vpack.c.b16 %v512, %v509
    %v609 = vpack.c.b16 %v513, %v510
    %706 = vmatprep.subr.bf16.mxu0 %v515
    %707 = vmatpush1.bf16.msra.mxu0 %v514
    %708 = vmatprep.subr.bf16.mxu0 %v518
    %709 = vmatpush1.bf16.msra.mxu0 %v517
    %710 = vmatprep.subr.bf16.mxu0 %v521
    %711 = vmatpush1.bf16.msra.mxu0 %v520
    %712 = vmatprep.subr.bf16.mxu0 %v524
    %713 = vmatpush1.bf16.msra.mxu0 %v523
    %714 = vmatprep.subr.bf16.mxu0 %v527
    %715 = vmatpush1.bf16.msra.mxu0 %v526
    %716 = vmatprep.subr.bf16.mxu0 %v530
    %717 = vmatpush1.bf16.msra.mxu0 %v529
    %718 = vmatprep.subr.bf16.mxu0 %v533
    %719 = vmatpush1.bf16.msra.mxu0 %v532
    %720 = vmatprep.subr.bf16.mxu0 %v536
    %721 = vmatpush1.bf16.msra.mxu0 %v535
    %722 = vmatprep.subr.bf16.mxu0 %v539
    %723 = vmatpush1.bf16.msra.mxu0 %v538
    %724 = vmatprep.subr.bf16.mxu0 %v542
    %725 = vmatpush1.bf16.msra.mxu0 %v541
    %726 = vmatprep.subr.bf16.mxu0 %v545
    %727 = vmatpush1.bf16.msra.mxu0 %v544
    %728 = vmatprep.subr.bf16.mxu0 %v548
    %729 = vmatpush1.bf16.msra.mxu0 %v547
    %730 = vmatprep.subr.bf16.mxu0 %v551
    %731 = vmatpush1.bf16.msra.mxu0 %v550
    %732 = vmatprep.subr.bf16.mxu0 %v554
    %733 = vmatpush1.bf16.msra.mxu0 %v553
    %734 = vmatprep.subr.bf16.mxu0 %v557
    %735 = vmatpush1.bf16.msra.mxu0 %v556
    %736 = vmatprep.subr.bf16.mxu0 %v560
    %737 = vmatpush1.bf16.msra.mxu0 %v559
    %738 = vmatprep.mubr.bf16.mxu0 %v46
    %739 = vmatmul.mubr.bf16.gmra.mrb[0].mxu0 %v45
    %v740 = vpop.f32.mrb[0].mxu0
    %v741 = vadd.f32 %v182, %v740
    %v742 = vpop.f32.mrb[0].mxu0
    %v743 = vadd.f32 %v186, %v742
    %v744 = vpop.f32.mrb[0].mxu0
    %v745 = vpop.f32.mrb[0].mxu0
    %746 = vdwg.mxu0
    %747 = vmatprep.subr.bf16.mxu0 %v563
    %748 = vmatpush1.bf16.msra.mxu0 %v562
    %749 = vmatprep.subr.bf16.mxu0 %v566
    %750 = vmatpush1.bf16.msra.mxu0 %v565
    %751 = vmatprep.subr.bf16.mxu0 %v569
    %752 = vmatpush1.bf16.msra.mxu0 %v568
    %753 = vmatprep.subr.bf16.mxu0 %v572
    %754 = vmatpush1.bf16.msra.mxu0 %v571
    %755 = vmatprep.subr.bf16.mxu0 %v575
    %756 = vmatpush1.bf16.msra.mxu0 %v574
    %757 = vmatprep.subr.bf16.mxu0 %v578
    %758 = vmatpush1.bf16.msra.mxu0 %v577
    %759 = vmatprep.subr.bf16.mxu0 %v581
    %760 = vmatpush1.bf16.msra.mxu0 %v580
    %761 = vmatprep.subr.bf16.mxu0 %v584
    %762 = vmatpush1.bf16.msra.mxu0 %v583
    %763 = vmatprep.subr.bf16.mxu0 %v587
    %764 = vmatpush1.bf16.msra.mxu0 %v586
    %765 = vmatprep.subr.bf16.mxu0 %v590
    %766 = vmatpush1.bf16.msra.mxu0 %v589
    %767 = vmatprep.subr.bf16.mxu0 %v593
    %768 = vmatpush1.bf16.msra.mxu0 %v592
    %769 = vmatprep.subr.bf16.mxu0 %v596
    %770 = vmatpush1.bf16.msra.mxu0 %v595
    %771 = vmatprep.subr.bf16.mxu0 %v599
    %772 = vmatpush1.bf16.msra.mxu0 %v598
    %773 = vmatprep.subr.bf16.mxu0 %v602
    %774 = vmatpush1.bf16.msra.mxu0 %v601
    %775 = vmatprep.subr.bf16.mxu0 %v605
    %776 = vmatpush1.bf16.msra.mxu0 %v604
    %777 = vmatprep.subr.bf16.mxu0 %v608
    %778 = vmatpush1.bf16.msra.mxu0 %v607
    %779 = vmatprep.mubr.bf16.mxu0 %v48
    %780 = vmatmul.mubr.bf16.gmra.mrb[0].mxu0 %v47
    %v781 = vpop.f32.mrb[0].mxu0
    %v782 = vadd.f32 %v741, %v781
    %v783 = vpop.f32.mrb[0].mxu0
    %v784 = vadd.f32 %v743, %v783
    %v785 = vpop.f32.mrb[0].mxu0
    %v786 = vpop.f32.mrb[0].mxu0
    %787 = vdwg.mxu0
    %788 = vmatprep.subr.bf16.mxu0 0
    %789 = vmatpush1.bf16.msra.mxu0 %v516
    %790 = vmatprep.subr.bf16.mxu0 0
    %791 = vmatpush1.bf16.msra.mxu0 %v519
    %792 = vmatprep.subr.bf16.mxu0 0
    %793 = vmatpush1.bf16.msra.mxu0 %v522
    %794 = vmatprep.subr.bf16.mxu0 0
    %795 = vmatpush1.bf16.msra.mxu0 %v525
    %796 = vmatprep.subr.bf16.mxu0 0
    %797 = vmatpush1.bf16.msra.mxu0 %v528
    %798 = vmatprep.subr.bf16.mxu0 0
    %799 = vmatpush1.bf16.msra.mxu0 %v531
    %800 = vmatprep.subr.bf16.mxu0 0
    %801 = vmatpush1.bf16.msra.mxu0 %v534
    %802 = vmatprep.subr.bf16.mxu0 0
    %803 = vmatpush1.bf16.msra.mxu0 %v537
    %804 = vmatprep.subr.bf16.mxu0 0
    %805 = vmatpush1.bf16.msra.mxu0 %v540
    %806 = vmatprep.subr.bf16.mxu0 0
    %807 = vmatpush1.bf16.msra.mxu0 %v543
    %808 = vmatprep.subr.bf16.mxu0 0
    %809 = vmatpush1.bf16.msra.mxu0 %v546
    %810 = vmatprep.subr.bf16.mxu0 0
    %811 = vmatpush1.bf16.msra.mxu0 %v549
    %812 = vmatprep.subr.bf16.mxu0 0
    %813 = vmatpush1.bf16.msra.mxu0 %v552
    %814 = vmatprep.subr.bf16.mxu0 0
    %815 = vmatpush1.bf16.msra.mxu0 %v555
    %816 = vmatprep.subr.bf16.mxu0 0
    %817 = vmatpush1.bf16.msra.mxu0 %v558
    %818 = vmatprep.subr.bf16.mxu0 0
    %819 = vmatpush1.bf16.msra.mxu0 %v561
    %820 = vmatprep.mubr.bf16.mxu0 %v46
    %821 = vmatmul.mubr.bf16.gmra.mrb[0].mxu0 %v45
    %v822 = vpop.f32.mrb[0].mxu0
    %v823 = vadd.f32 %v190, %v822
    %v824 = vpop.f32.mrb[0].mxu0
    %v825 = vpop.f32.mrb[0].mxu0
    %v826 = vpop.f32.mrb[0].mxu0
    %827 = vdwg.mxu0
    %828 = vmatprep.subr.bf16.mxu0 0
    %829 = vmatpush1.bf16.msra.mxu0 %v564
    %830 = vmatprep.subr.bf16.mxu0 0
    %831 = vmatpush1.bf16.msra.mxu0 %v567
    %832 = vmatprep.subr.bf16.mxu0 0
    %833 = vmatpush1.bf16.msra.mxu0 %v570
    %834 = vmatprep.subr.bf16.mxu0 0
    %835 = vmatpush1.bf16.msra.mxu0 %v573
    %836 = vmatprep.subr.bf16.mxu0 0
    %837 = vmatpush1.bf16.msra.mxu0 %v576
    %838 = vmatprep.subr.bf16.mxu0 0
    %839 = vmatpush1.bf16.msra.mxu0 %v579
    %840 = vmatprep.subr.bf16.mxu0 0
    %841 = vmatpush1.bf16.msra.mxu0 %v582
    %842 = vmatprep.subr.bf16.mxu0 0
    %843 = vmatpush1.bf16.msra.mxu0 %v585
    %844 = vmatprep.subr.bf16.mxu0 0
    %845 = vmatpush1.bf16.msra.mxu0 %v588
    %846 = vmatprep.subr.bf16.mxu0 0
    %847 = vmatpush1.bf16.msra.mxu0 %v591
    %848 = vmatprep.subr.bf16.mxu0 0
    %849 = vmatpush1.bf16.msra.mxu0 %v594
    %850 = vmatprep.subr.bf16.mxu0 0
    %851 = vmatpush1.bf16.msra.mxu0 %v597
    %852 = vmatprep.subr.bf16.mxu0 0
    %853 = vmatpush1.bf16.msra.mxu0 %v600
    %854 = vmatprep.subr.bf16.mxu0 0
    %855 = vmatpush1.bf16.msra.mxu0 %v603
    %856 = vmatprep.subr.bf16.mxu0 0
    %857 = vmatpush1.bf16.msra.mxu0 %v606
    %858 = vmatprep.subr.bf16.mxu0 0
    %859 = vmatpush1.bf16.msra.mxu0 %v609
    %860 = vmatprep.mubr.bf16.mxu0 %v48
    %861 = vmatmul.mubr.bf16.gmra.mrb[0].mxu0 %v47
    %v862 = vpop.f32.mrb[0].mxu0
    %v863 = vadd.f32 %v823, %v862
    %v864 = vpop.f32.mrb[0].mxu0
    %v865 = vpop.f32.mrb[0].mxu0
    %v866 = vpop.f32.mrb[0].mxu0
    %867 = vdwg.mxu0
    %868 = vmax.xlane.f32.xlu0 %v782
    %v869 = vpop.xlane.xlu0 %868
    %v870 = vsub.f32 %v782, %v869
    %v871 = vmul.f32 %v870, 1.442695
    %v872 = vpow.pop %v871
    %873 = vadd.xlane.f32.xlu0 %v872
    %v874 = vpop.xlane.xlu0 %873
    %v875 = vrcp.pop %v874
    %v876 = vmul.f32 %v872, %v875
    %877 = vst [vmem:[%s3] sm:$0xff] %v876
    %878 = vmax.xlane.f32.xlu0 %v784
    %v879 = vpop.xlane.xlu0 %878
    %v880 = vsub.f32 %v784, %v879
    %v881 = vmul.f32 %v880, 1.442695
    %v882 = vpow.pop %v881
    %883 = vadd.xlane.f32.xlu0 %v882
    %v884 = vpop.xlane.xlu0 %883
    %v885 = vrcp.pop %v884
    %v886 = vmul.f32 %v882, %v885
    %887 = vst [vmem:[%s3 + $0x8] sm:$0xff] %v886
    %888 = vmax.xlane.f32.xlu0 %v863
    %v889 = vpop.xlane.xlu0 %888
    %v890 = vsub.f32 %v863, %v889
    %v891 = vmul.f32 %v890, 1.442695
    %v892 = vpow.pop %v891
    %893 = vadd.xlane.f32.xlu0 %v892
    %v894 = vpop.xlane.xlu0 %893
    %v895 = vrcp.pop %v894
    %v896 = vmul.f32 %v892, %v895
    %897 = vst [vmem:[%s3 + $0x10] sm:$0xff] %v896
    // Predicated region
    $region22: #{_fused_forward.1} parent=1 // pred_check
      _
    $region23: #{_fused_forward.1} parent=1 // pred_check_branch
      %899 = sbr.rel (0) target = $region25
    $region24: #{_fused_forward.1} parent=1 // pred_region
      _
    $region25: #{_fused_forward.1} parent=1 // pred_fallthru
      _
    // Predicated region
    $region26: #{_fused_forward.1} parent=1 // pred_check
      _
    $region27: #{_fused_forward.1} parent=1 // pred_check_branch
      %901 = sbr.rel (0) target = $region29
    $region28: #{_fused_forward.1} parent=1 // pred_region
      _
    $region29: #{_fused_forward.1} parent=1 // pred_fallthru
      _
    %902 = vsyncpa [#allocation3], 1
    %903 = vsyncpa [#allocation5], 1

</llo_original>
